<compile_context>
chip_gen: v7x
topology: tpu7x:2x2x1
jax: 0.10.0
libtpu: 0.0.40
codegen_flags: <defaults>
</compile_context>

<pallas_src>
import numpy as np
import jax
import jax.numpy as jnp
from jax.experimental import pallas as pl
from jax.experimental.pallas import tpu as pltpu


def _round_up(x, m):
    return ((x + m - 1) // m) * m


# -----------------------------------------------------------------------------
# Kernel
# -----------------------------------------------------------------------------
def lstm_chars_kernel(idx_ref,        # SMEM (T, B) int32  (scalar prefetch)
                      emb_ref,        # VMEM (V, H)
                      w_ref,          # VMEM (L+1, 2H, W)   fused W_ih|W_hh (+ decoder)
                      b_ref,          # VMEM (L+1, 1, W)    fused biases   (+ decoder)
                      st0_ref,        # VMEM (2, L, B, H)   initial (h, c)
                      logits_ref,     # VMEM block (1, B, P)   per-step padded logits
                      stout_ref,      # VMEM (B, 2*L*H)        packed final (h, c)
                      h_sc, c_sc):    # VMEM scratch (L, B, H) carried across steps
    V, H = emb_ref.shape
    L, B = h_sc.shape[0], h_sc.shape[1]
    W = w_ref.shape[2]
    P = logits_ref.shape[2]
    G = 4 * H

    t = pl.program_id(0)

    # ---- load initial hidden/cell state into resident scratch on the first step ----
    @pl.when(t == 0)
    def _init():
        h_sc[...] = st0_ref[0]
        c_sc[...] = st0_ref[1]

    # ---- Embedding: exact gather as one-hot(ids) @ emb on the MXU.
    # Token ids are read as SMEM scalars; the one-hot rows are built by comparing a
    # lane iota against each scalar (pure VPU work), so no (B,1) vector-memory tile.
    viota = jax.lax.broadcasted_iota(jnp.int32, (1, V), 1)           # (1, V)
    onehot = jnp.concatenate(
        [(viota == idx_ref[t, bb]).astype(jnp.float32) for bb in range(B)],
        axis=0)                                                       # (B, V)
    x = jnp.dot(onehot, emb_ref[...], preferred_element_type=jnp.float32)  # (B, H)

    # ---- Multi-layer LSTM cell (PyTorch gate order i, f, g, o) ----
    hs, cs = [], []
    for layer in range(L):
        h = h_sc[layer]                                               # (B, H)
        c = c_sc[layer]                                               # (B, H)
        xh = jnp.concatenate([x, h], axis=-1)                         # (B, 2H)
        g_full = (jnp.dot(xh, w_ref[layer],
                          preferred_element_type=jnp.float32)
                  + b_ref[layer])                                     # (B, W)
        gates = g_full[:, :G]                                         # no-op when W == 4H

        # Full-width transcendentals on the EUP, then cheap per-gate combines.
        sg = jax.nn.sigmoid(gates)                                    # (B, 4H)
        tg = jnp.tanh(gates)                                          # (B, 4H)
        i_g = sg[:, 0 * H:1 * H]
        f_g = sg[:, 1 * H:2 * H]
        g_g = tg[:, 2 * H:3 * H]
        o_g = sg[:, 3 * H:4 * H]

        c_new = f_g * c + i_g * g_g
        h_new = o_g * jnp.tanh(c_new)

        h_sc[layer] = h_new
        c_sc[layer] = c_new
        hs.append(h_new)
        cs.append(c_new)
        x = h_new                                                     # input to next layer

    # ---- Decoder = "layer L" of the merged weight stack (rows H:2H are zero, so the
    # second half of the concat contributes nothing).  Result is already lane-padded.
    xh_dec = jnp.concatenate([x, cs[-1]], axis=-1)                    # (B, 2H)
    dec = (jnp.dot(xh_dec, w_ref[L], preferred_element_type=jnp.float32)
           + b_ref[L])                                                # (B, W)
    logits_ref[...] = dec[:, :P].reshape(1, B, P)                     # full-width store

    # ---- Pack final (h, c) of all layers into one lane-dense slab on the last step ----
    @pl.when(t == pl.num_programs(0) - 1)
    def _finalize():
        stout_ref[...] = jnp.concatenate(
            [jnp.concatenate([hs[l], cs[l]], axis=-1) for l in range(L)], axis=-1)


# -----------------------------------------------------------------------------
# Wrappers
# -----------------------------------------------------------------------------
def lstm_chars_seq_forward(idx_seq, packed, h0, c0):
    """Run T LSTM steps in ONE pallas_call (weights DMA'd once). idx_seq: (T, B) int32."""
    emb, w_all, b_all = packed["emb"], packed["w_all"], packed["b_all"]
    O, P = packed["out_size"], packed["out_pad"]
    T, B = idx_seq.shape
    V, H = emb.shape
    L = w_all.shape[0] - 1
    W = w_all.shape[2]

    state0 = jnp.stack([h0, c0])                                      # (2, L, B, H)

    grid_spec = pltpu.PrefetchScalarGridSpec(
        num_scalar_prefetch=1,                                        # idx_seq -> SMEM
        grid=(T,),
        in_specs=[
            pl.BlockSpec((V, H), lambda t, idx: (0, 0)),              # emb (resident)
            pl.BlockSpec((L + 1, 2 * H, W), lambda t, idx: (0, 0, 0)),  # fused weights
            pl.BlockSpec((L + 1, 1, W), lambda t, idx: (0, 0, 0)),      # fused biases
            pl.BlockSpec((2, L, B, H), lambda t, idx: (0, 0, 0, 0)),    # packed h0/c0
        ],
        out_specs=[
            pl.BlockSpec((1, B, P), lambda t, idx: (t, 0, 0)),        # per-step logits
            pl.BlockSpec((B, 2 * L * H), lambda t, idx: (0, 0)),      # packed final state
        ],
        scratch_shapes=[pltpu.VMEM((L, B, H), jnp.float32),
                        pltpu.VMEM((L, B, H), jnp.float32)],
    )

    logits_pad, state_slab = pl.pallas_call(
        lstm_chars_kernel,
        grid_spec=grid_spec,
        out_shape=(jax.ShapeDtypeStruct((T, B, P), jnp.float32),
                   jax.ShapeDtypeStruct((B, 2 * L * H), jnp.float32)),
        compiler_params=pltpu.CompilerParams(
            dimension_semantics=("arbitrary",)),                      # time recurrence
    )(idx_seq.astype(jnp.int32), emb, w_all, b_all, state0)

    logits = logits_pad[:, :, :O]                                     # (T, B, O)
    st = state_slab.reshape(B, L, 2, H)                               # [h_l | c_l] per layer
    h_n = jnp.transpose(st[:, :, 0, :], (1, 0, 2))                    # (L, B, H)
    c_n = jnp.transpose(st[:, :, 1, :], (1, 0, 2))                    # (L, B, H)
    return logits, (h_n, c_n)


def lstm_chars_forward(idx, packed, hidden):
    """Module-equivalent single step: idx (B,) int32, hidden = (h0, c0)."""
    h0, c0 = hidden
    logits_seq, hidden_n = lstm_chars_seq_forward(idx[None, :], packed, h0, c0)
    return logits_seq[0], hidden_n


# -----------------------------------------------------------------------------
# Parameters (raw PyTorch layout) + packing for the kernel
# -----------------------------------------------------------------------------
def init_params(key, input_size, hidden_size, output_size, n_layers):
    scale = 1.0 / np.sqrt(hidden_size)
    ks = jax.random.split(key, 1 + 4 * n_layers + 2)

    emb = jax.random.normal(ks[0], (input_size, hidden_size), jnp.float32)
    w_ih, w_hh, b_ih, b_hh = [], [], [], []
    for l in range(n_layers):
        k0, k1, k2, k3 = ks[1 + 4 * l: 1 + 4 * (l + 1)]
        w_ih.append(jax.random.uniform(k0, (4 * hidden_size, hidden_size),
                                       jnp.float32, -scale, scale))
        w_hh.append(jax.random.uniform(k1, (4 * hidden_size, hidden_size),
                                       jnp.float32, -scale, scale))
        b_ih.append(jax.random.uniform(k2, (4 * hidden_size,), jnp.float32, -scale, scale))
        b_hh.append(jax.random.uniform(k3, (4 * hidden_size,), jnp.float32, -scale, scale))
    w_dec = jax.random.uniform(ks[-2], (output_size, hidden_size), jnp.float32, -scale, scale)
    b_dec = jax.random.uniform(ks[-1], (output_size,), jnp.float32, -scale, scale)

    return (emb, jnp.stack(w_ih), jnp.stack(w_hh),
            jnp.stack(b_ih), jnp.stack(b_hh), w_dec, b_dec)


def pack_params(raw):
    emb, w_ih, w_hh, b_ih, b_hh, w_dec, b_dec = raw
    L, G, H = w_ih.shape                      # G = 4H
    O = w_dec.shape[0]
    P = _round_up(O, 128)                     # lane-dense decoder output width
    W = max(G, P)

    w_all = jnp.zeros((L + 1, 2 * H, W), jnp.float32)
    b_all = jnp.zeros((L + 1, 1, W), jnp.float32)
    for l in range(L):
        w_all = w_all.at[l, :H, :G].set(w_ih[l].T)      # x @ W_ih^T part
        w_all = w_all.at[l, H:, :G].set(w_hh[l].T)      # h @ W_hh^T part
        b_all = b_all.at[l, 0, :G].set(b_ih[l] + b_hh[l])
    w_all = w_all.at[L, :H, :O].set(w_dec.T)            # decoder as "layer L" (rows H:2H = 0)
    b_all = b_all.at[L, 0, :O].set(b_dec)

    return {"emb": emb, "w_all": w_all, "b_all": b_all, "out_size": O, "out_pad": P}


# -----------------------------------------------------------------------------
# Pure-JAX reference mirroring PyTorch LstmChars.forward applied step by step
# -----------------------------------------------------------------------------
def reference_seq_forward(idx_seq, raw, h0, c0):
    emb, w_ih, w_hh, b_ih, b_hh, w_dec, b_dec = raw
    H = emb.shape[1]
    L = w_ih.shape[0]
    h = [h0[l] for l in range(L)]
    c = [c0[l] for l in range(L)]
    logits = []
    for t in range(idx_seq.shape[0]):
        x = emb[idx_seq[t]]
        for l in range(L):
            gates = x @ w_ih[l].T + b_ih[l] + h[l] @ w_hh[l].T + b_hh[l]
            i_g = jax.nn.sigmoid(gates[:, 0 * H:1 * H])
            f_g = jax.nn.sigmoid(gates[:, 1 * H:2 * H])
            g_g = jnp.tanh(gates[:, 2 * H:3 * H])
            o_g = jax.nn.sigmoid(gates[:, 3 * H:4 * H])
            c[l] = f_g * c[l] + i_g * g_g
            h[l] = o_g * jnp.tanh(c[l])
            x = h[l]
        logits.append(x @ w_dec.T + b_dec)
    return jnp.stack(logits), jnp.stack(h), jnp.stack(c)


if __name__ == "__main__":
    input_size = 64      # vocab size
    hidden_size = 32
    output_size = 16
    n_layers = 2
    batch = 8
    seq_len = 6

    key = jax.random.PRNGKey(0)
    k_params, k_idx = jax.random.split(key)

    raw = init_params(k_params, input_size, hidden_size, output_size, n_layers)
    packed = pack_params(raw)

    idx_seq = jax.random.randint(k_idx, (seq_len, batch), 0, input_size, dtype=jnp.int32)
    h0 = jnp.zeros((n_layers, batch, hidden_size), jnp.float32)   # init_hidden
    c0 = jnp.zeros((n_layers, batch, hidden_size), jnp.float32)

    # (1) module-equivalent single step (nn.LSTM with seq_len == 1)
    logits1, (h1, c1) = lstm_chars_forward(idx_seq[0], packed, (h0, c0))
    # (2) amortized multi-step variant: one kernel call for the whole sequence
    logitsT, (hT, cT) = lstm_chars_seq_forward(idx_seq, packed, h0, c0)
    jax.block_until_ready((logits1, h1, c1, logitsT, hT, cT))

    ref_l1, ref_h1, ref_c1 = reference_seq_forward(idx_seq[:1], raw, h0, c0)
    ref_lT, ref_hT, ref_cT = reference_seq_forward(idx_seq, raw, h0, c0)

    np.testing.assert_allclose(np.asarray(logits1), np.asarray(ref_l1[0]), rtol=1e-4, atol=1e-4)
    np.testing.assert_allclose(np.asarray(h1), np.asarray(ref_h1), rtol=1e-4, atol=1e-4)
    np.testing.assert_allclose(np.asarray(c1), np.asarray(ref_c1), rtol=1e-4, atol=1e-4)
    np.testing.assert_allclose(np.asarray(logitsT), np.asarray(ref_lT), rtol=1e-4, atol=1e-4)
    np.testing.assert_allclose(np.asarray(hT), np.asarray(ref_hT), rtol=1e-4, atol=1e-4)
    np.testing.assert_allclose(np.asarray(cT), np.asarray(ref_cT), rtol=1e-4, atol=1e-4)

    print("KERNEL_OK")
</pallas_src>

<mosaic_0001>
module attributes {stable_mosaic.version = 11 : i64} {
  func.func @lstm_chars_kernel(%arg0: i32, %arg1: memref<1x8xi32, #tpu.memory_space<smem>>, %arg2: memref<64x32xf32, #tpu.memory_space<vmem>>, %arg3: memref<3x64x128xf32, #tpu.memory_space<vmem>>, %arg4: memref<3x1x128xf32, #tpu.memory_space<vmem>>, %arg5: memref<2x2x8x32xf32, #tpu.memory_space<vmem>>, %arg6: memref<1x8x128xf32, #tpu.memory_space<vmem>>, %arg7: memref<8x128xf32, #tpu.memory_space<vmem>>, %arg8: memref<2x8x32xf32, #tpu.memory_space<vmem>>, %arg9: memref<2x8x32xf32, #tpu.memory_space<vmem>>) attributes {dimension_semantics = [#tpu.dimension_semantics<arbitrary>], iteration_bounds = array<i64: 1>, scalar_prefetch = 1 : i64, scratch_operands = 2 : i64, tpu.core_type = #tpu.core_type<tc>, window_params = [{pipeline_mode = #tpu.pipeline_mode<synchronous>, transform_indices = @transform_0, window_bounds = array<i64: 64, 32>}, {pipeline_mode = #tpu.pipeline_mode<synchronous>, transform_indices = @transform_1, window_bounds = array<i64: 3, 64, 128>}, {pipeline_mode = #tpu.pipeline_mode<synchronous>, transform_indices = @transform_2, window_bounds = array<i64: 3, 1, 128>}, {pipeline_mode = #tpu.pipeline_mode<synchronous>, transform_indices = @transform_3, window_bounds = array<i64: 2, 2, 8, 32>}, {transform_indices = @transform_4, window_bounds = array<i64: 1, 8, 128>}, {pipeline_mode = #tpu.pipeline_mode<synchronous>, transform_indices = @transform_5, window_bounds = array<i64: 8, 128>}]} {
    %c0_i32 = arith.constant 0 : i32
    %0 = arith.cmpi eq, %arg0, %c0_i32 : i32
    %1 = arith.extui %0 : i1 to i32
    %c0_i32_0 = arith.constant 0 : i32
    %2 = arith.cmpi ne, %1, %c0_i32_0 : i32
    scf.if %2 {
      %c0_55 = arith.constant 0 : index
      %c0_56 = arith.constant 0 : index
      %c0_57 = arith.constant 0 : index
      %c0_58 = arith.constant 0 : index
      %134 = vector.load %arg5[%c0_55, %c0_56, %c0_57, %c0_58] : memref<2x2x8x32xf32, #tpu.memory_space<vmem>>, vector<1x2x8x32xf32>
      %135 = vector.shape_cast %134 : vector<1x2x8x32xf32> to vector<2x8x32xf32>
      %c0_59 = arith.constant 0 : index
      %c0_60 = arith.constant 0 : index
      %c0_61 = arith.constant 0 : index
      %136 = vector.load %arg8[%c0_59, %c0_60, %c0_61] : memref<2x8x32xf32, #tpu.memory_space<vmem>>, vector<2x8x32xf32>
      tpu.vector_store %arg8[%c0_59, %c0_60, %c0_61], %135 {strides = array<i32>} : memref<2x8x32xf32, #tpu.memory_space<vmem>>, vector<2x8x32xf32>,
      %c1_62 = arith.constant 1 : index
      %c0_63 = arith.constant 0 : index
      %c0_64 = arith.constant 0 : index
      %c0_65 = arith.constant 0 : index
      %137 = vector.load %arg5[%c1_62, %c0_63, %c0_64, %c0_65] : memref<2x2x8x32xf32, #tpu.memory_space<vmem>>, vector<1x2x8x32xf32>
      %138 = vector.shape_cast %137 : vector<1x2x8x32xf32> to vector<2x8x32xf32>
      %c0_66 = arith.constant 0 : index
      %c0_67 = arith.constant 0 : index
      %c0_68 = arith.constant 0 : index
      %139 = vector.load %arg9[%c0_66, %c0_67, %c0_68] : memref<2x8x32xf32, #tpu.memory_space<vmem>>, vector<2x8x32xf32>
      tpu.vector_store %arg9[%c0_66, %c0_67, %c0_68], %138 {strides = array<i32>} : memref<2x8x32xf32, #tpu.memory_space<vmem>>, vector<2x8x32xf32>,
    } else {
    }
    %3 = tpu.iota {dimensions = array<i32: 1>} : vector<1x64xi32>
    %4 = arith.index_cast %arg0 : i32 to index
    %c0 = arith.constant 0 : index
    %5 = memref.load %arg1[%4, %c0] : memref<1x8xi32, #tpu.memory_space<smem>>
    %6 = vector.broadcast %5 : i32 to vector<1x64xi32>
    %7 = arith.cmpi eq, %3, %6 : vector<1x64xi32>
    %8 = arith.extui %7 : vector<1x64xi1> to vector<1x64xi32>
    %9 = arith.sitofp %8 : vector<1x64xi32> to vector<1x64xf32>
    %10 = arith.index_cast %arg0 : i32 to index
    %c1 = arith.constant 1 : index
    %11 = memref.load %arg1[%10, %c1] : memref<1x8xi32, #tpu.memory_space<smem>>
    %12 = vector.broadcast %11 : i32 to vector<1x64xi32>
    %13 = arith.cmpi eq, %3, %12 : vector<1x64xi32>
    %14 = arith.extui %13 : vector<1x64xi1> to vector<1x64xi32>
    %15 = arith.sitofp %14 : vector<1x64xi32> to vector<1x64xf32>
    %16 = arith.index_cast %arg0 : i32 to index
    %c2 = arith.constant 2 : index
    %17 = memref.load %arg1[%16, %c2] : memref<1x8xi32, #tpu.memory_space<smem>>
    %18 = vector.broadcast %17 : i32 to vector<1x64xi32>
    %19 = arith.cmpi eq, %3, %18 : vector<1x64xi32>
    %20 = arith.extui %19 : vector<1x64xi1> to vector<1x64xi32>
    %21 = arith.sitofp %20 : vector<1x64xi32> to vector<1x64xf32>
    %22 = arith.index_cast %arg0 : i32 to index
    %c3 = arith.constant 3 : index
    %23 = memref.load %arg1[%22, %c3] : memref<1x8xi32, #tpu.memory_space<smem>>
    %24 = vector.broadcast %23 : i32 to vector<1x64xi32>
    %25 = arith.cmpi eq, %3, %24 : vector<1x64xi32>
    %26 = arith.extui %25 : vector<1x64xi1> to vector<1x64xi32>
    %27 = arith.sitofp %26 : vector<1x64xi32> to vector<1x64xf32>
    %28 = arith.index_cast %arg0 : i32 to index
    %c4 = arith.constant 4 : index
    %29 = memref.load %arg1[%28, %c4] : memref<1x8xi32, #tpu.memory_space<smem>>
    %30 = vector.broadcast %29 : i32 to vector<1x64xi32>
    %31 = arith.cmpi eq, %3, %30 : vector<1x64xi32>
    %32 = arith.extui %31 : vector<1x64xi1> to vector<1x64xi32>
    %33 = arith.sitofp %32 : vector<1x64xi32> to vector<1x64xf32>
    %34 = arith.index_cast %arg0 : i32 to index
    %c5 = arith.constant 5 : index
    %35 = memref.load %arg1[%34, %c5] : memref<1x8xi32, #tpu.memory_space<smem>>
    %36 = vector.broadcast %35 : i32 to vector<1x64xi32>
    %37 = arith.cmpi eq, %3, %36 : vector<1x64xi32>
    %38 = arith.extui %37 : vector<1x64xi1> to vector<1x64xi32>
    %39 = arith.sitofp %38 : vector<1x64xi32> to vector<1x64xf32>
    %40 = arith.index_cast %arg0 : i32 to index
    %c6 = arith.constant 6 : index
    %41 = memref.load %arg1[%40, %c6] : memref<1x8xi32, #tpu.memory_space<smem>>
    %42 = vector.broadcast %41 : i32 to vector<1x64xi32>
    %43 = arith.cmpi eq, %3, %42 : vector<1x64xi32>
    %44 = arith.extui %43 : vector<1x64xi1> to vector<1x64xi32>
    %45 = arith.sitofp %44 : vector<1x64xi32> to vector<1x64xf32>
    %46 = arith.index_cast %arg0 : i32 to index
    %c7 = arith.constant 7 : index
    %47 = memref.load %arg1[%46, %c7] : memref<1x8xi32, #tpu.memory_space<smem>>
    %48 = vector.broadcast %47 : i32 to vector<1x64xi32>
    %49 = arith.cmpi eq, %3, %48 : vector<1x64xi32>
    %50 = arith.extui %49 : vector<1x64xi1> to vector<1x64xi32>
    %51 = arith.sitofp %50 : vector<1x64xi32> to vector<1x64xf32>
    %52 = tpu.concatenate %9, %15, %21, %27, %33, %39, %45, %51 in 0 : vector<1x64xf32>, vector<1x64xf32>, vector<1x64xf32>, vector<1x64xf32>, vector<1x64xf32>, vector<1x64xf32>, vector<1x64xf32>, vector<1x64xf32> -> vector<8x64xf32>
    %c0_1 = arith.constant 0 : index
    %c0_2 = arith.constant 0 : index
    %53 = vector.load %arg2[%c0_1, %c0_2] : memref<64x32xf32, #tpu.memory_space<vmem>>, vector<64x32xf32>
    %cst = arith.constant dense<0.000000e+00> : vector<8x32xf32>
    %54 = tpu.matmul %52, %53, %cst {dimension_numbers = #tpu.dot_dimension_numbers<[1], [0], [0], [1], [0, 0, 1, 1], [], []>} : vector<8x64xf32>, vector<64x32xf32>, vector<8x32xf32> -> vector<8x32xf32>
    %c0_3 = arith.constant 0 : index
    %c0_4 = arith.constant 0 : index
    %c0_5 = arith.constant 0 : index
    %55 = vector.load %arg8[%c0_3, %c0_4, %c0_5] : memref<2x8x32xf32, #tpu.memory_space<vmem>>, vector<1x8x32xf32>
    %56 = vector.shape_cast %55 : vector<1x8x32xf32> to vector<8x32xf32>
    %c0_6 = arith.constant 0 : index
    %c0_7 = arith.constant 0 : index
    %c0_8 = arith.constant 0 : index
    %57 = vector.load %arg9[%c0_6, %c0_7, %c0_8] : memref<2x8x32xf32, #tpu.memory_space<vmem>>, vector<1x8x32xf32>
    %58 = vector.shape_cast %57 : vector<1x8x32xf32> to vector<8x32xf32>
    %59 = tpu.concatenate %54, %56 in 1 : vector<8x32xf32>, vector<8x32xf32> -> vector<8x64xf32>
    %c0_9 = arith.constant 0 : index
    %c0_10 = arith.constant 0 : index
    %c0_11 = arith.constant 0 : index
    %60 = vector.load %arg3[%c0_9, %c0_10, %c0_11] : memref<3x64x128xf32, #tpu.memory_space<vmem>>, vector<1x64x128xf32>
    %61 = vector.shape_cast %60 : vector<1x64x128xf32> to vector<64x128xf32>
    %cst_12 = arith.constant dense<0.000000e+00> : vector<8x128xf32>
    %62 = tpu.matmul %59, %61, %cst_12 {dimension_numbers = #tpu.dot_dimension_numbers<[1], [0], [0], [1], [0, 0, 1, 1], [], []>} : vector<8x64xf32>, vector<64x128xf32>, vector<8x128xf32> -> vector<8x128xf32>
    %c0_13 = arith.constant 0 : index
    %c0_14 = arith.constant 0 : index
    %c0_15 = arith.constant 0 : index
    %63 = vector.load %arg4[%c0_13, %c0_14, %c0_15] : memref<3x1x128xf32, #tpu.memory_space<vmem>>, vector<1x1x128xf32>
    %64 = vector.shape_cast %63 : vector<1x1x128xf32> to vector<1x128xf32>
    %65 = vector.broadcast %64 : vector<1x128xf32> to vector<8x128xf32>
    %66 = arith.addf %62, %65 : vector<8x128xf32>
    %67 = arith.negf %66 : vector<8x128xf32>
    %68 = math.exp %67 : vector<8x128xf32>
    %cst_16 = arith.constant 1.000000e+00 : f32
    %69 = vector.broadcast %cst_16 : f32 to vector<8x128xf32>
    %70 = arith.addf %69, %68 : vector<8x128xf32>
    %71 = arith.divf %69, %70 : vector<8x128xf32>
    %72 = math.tanh %66 : vector<8x128xf32>
    %73 = vector.extract_strided_slice %71 {offsets = [0, 0], sizes = [8, 32], strides = [1, 1]} : vector<8x128xf32> to vector<8x32xf32>
    %74 = vector.extract_strided_slice %71 {offsets = [0, 32], sizes = [8, 32], strides = [1, 1]} : vector<8x128xf32> to vector<8x32xf32>
    %75 = vector.extract_strided_slice %72 {offsets = [0, 64], sizes = [8, 32], strides = [1, 1]} : vector<8x128xf32> to vector<8x32xf32>
    %76 = vector.extract_strided_slice %71 {offsets = [0, 96], sizes = [8, 32], strides = [1, 1]} : vector<8x128xf32> to vector<8x32xf32>
    %77 = arith.mulf %74, %58 : vector<8x32xf32>
    %78 = arith.mulf %73, %75 : vector<8x32xf32>
    %79 = arith.addf %77, %78 : vector<8x32xf32>
    %80 = math.tanh %79 : vector<8x32xf32>
    %81 = arith.mulf %76, %80 : vector<8x32xf32>
    %c0_17 = arith.constant 0 : index
    %c0_18 = arith.constant 0 : index
    %c0_19 = arith.constant 0 : index
    %82 = vector.load %arg8[%c0_17, %c0_18, %c0_19] : memref<2x8x32xf32, #tpu.memory_space<vmem>>, vector<1x8x32xf32>
    %83 = vector.shape_cast %82 : vector<1x8x32xf32> to vector<8x32xf32>
    %84 = vector.shape_cast %81 : vector<8x32xf32> to vector<1x8x32xf32>
    tpu.vector_store %arg8[%c0_17, %c0_18, %c0_19], %84 {strides = array<i32>} : memref<2x8x32xf32, #tpu.memory_space<vmem>>, vector<1x8x32xf32>,
    %c0_20 = arith.constant 0 : index
    %c0_21 = arith.constant 0 : index
    %c0_22 = arith.constant 0 : index
    %85 = vector.load %arg9[%c0_20, %c0_21, %c0_22] : memref<2x8x32xf32, #tpu.memory_space<vmem>>, vector<1x8x32xf32>
    %86 = vector.shape_cast %85 : vector<1x8x32xf32> to vector<8x32xf32>
    %87 = vector.shape_cast %79 : vector<8x32xf32> to vector<1x8x32xf32>
    tpu.vector_store %arg9[%c0_20, %c0_21, %c0_22], %87 {strides = array<i32>} : memref<2x8x32xf32, #tpu.memory_space<vmem>>, vector<1x8x32xf32>,
    %c1_23 = arith.constant 1 : index
    %c0_24 = arith.constant 0 : index
    %c0_25 = arith.constant 0 : index
    %88 = vector.load %arg8[%c1_23, %c0_24, %c0_25] : memref<2x8x32xf32, #tpu.memory_space<vmem>>, vector<1x8x32xf32>
    %89 = vector.shape_cast %88 : vector<1x8x32xf32> to vector<8x32xf32>
    %c1_26 = arith.constant 1 : index
    %c0_27 = arith.constant 0 : index
    %c0_28 = arith.constant 0 : index
    %90 = vector.load %arg9[%c1_26, %c0_27, %c0_28] : memref<2x8x32xf32, #tpu.memory_space<vmem>>, vector<1x8x32xf32>
    %91 = vector.shape_cast %90 : vector<1x8x32xf32> to vector<8x32xf32>
    %92 = tpu.concatenate %81, %89 in 1 : vector<8x32xf32>, vector<8x32xf32> -> vector<8x64xf32>
    %c1_29 = arith.constant 1 : index
    %c0_30 = arith.constant 0 : index
    %c0_31 = arith.constant 0 : index
    %93 = vector.load %arg3[%c1_29, %c0_30, %c0_31] : memref<3x64x128xf32, #tpu.memory_space<vmem>>, vector<1x64x128xf32>
    %94 = vector.shape_cast %93 : vector<1x64x128xf32> to vector<64x128xf32>
    %cst_32 = arith.constant dense<0.000000e+00> : vector<8x128xf32>
    %95 = tpu.matmul %92, %94, %cst_32 {dimension_numbers = #tpu.dot_dimension_numbers<[1], [0], [0], [1], [0, 0, 1, 1], [], []>} : vector<8x64xf32>, vector<64x128xf32>, vector<8x128xf32> -> vector<8x128xf32>
    %c1_33 = arith.constant 1 : index
    %c0_34 = arith.constant 0 : index
    %c0_35 = arith.constant 0 : index
    %96 = vector.load %arg4[%c1_33, %c0_34, %c0_35] : memref<3x1x128xf32, #tpu.memory_space<vmem>>, vector<1x1x128xf32>
    %97 = vector.shape_cast %96 : vector<1x1x128xf32> to vector<1x128xf32>
    %98 = vector.broadcast %97 : vector<1x128xf32> to vector<8x128xf32>
    %99 = arith.addf %95, %98 : vector<8x128xf32>
    %100 = arith.negf %99 : vector<8x128xf32>
    %101 = math.exp %100 : vector<8x128xf32>
    %cst_36 = arith.constant 1.000000e+00 : f32
    %102 = vector.broadcast %cst_36 : f32 to vector<8x128xf32>
    %103 = arith.addf %102, %101 : vector<8x128xf32>
    %104 = arith.divf %102, %103 : vector<8x128xf32>
    %105 = math.tanh %99 : vector<8x128xf32>
    %106 = vector.extract_strided_slice %104 {offsets = [0, 0], sizes = [8, 32], strides = [1, 1]} : vector<8x128xf32> to vector<8x32xf32>
    %107 = vector.extract_strided_slice %104 {offsets = [0, 32], sizes = [8, 32], strides = [1, 1]} : vector<8x128xf32> to vector<8x32xf32>
    %108 = vector.extract_strided_slice %105 {offsets = [0, 64], sizes = [8, 32], strides = [1, 1]} : vector<8x128xf32> to vector<8x32xf32>
    %109 = vector.extract_strided_slice %104 {offsets = [0, 96], sizes = [8, 32], strides = [1, 1]} : vector<8x128xf32> to vector<8x32xf32>
    %110 = arith.mulf %107, %91 : vector<8x32xf32>
    %111 = arith.mulf %106, %108 : vector<8x32xf32>
    %112 = arith.addf %110, %111 : vector<8x32xf32>
    %113 = math.tanh %112 : vector<8x32xf32>
    %114 = arith.mulf %109, %113 : vector<8x32xf32>
    %c1_37 = arith.constant 1 : index
    %c0_38 = arith.constant 0 : index
    %c0_39 = arith.constant 0 : index
    %115 = vector.load %arg8[%c1_37, %c0_38, %c0_39] : memref<2x8x32xf32, #tpu.memory_space<vmem>>, vector<1x8x32xf32>
    %116 = vector.shape_cast %115 : vector<1x8x32xf32> to vector<8x32xf32>
    %117 = vector.shape_cast %114 : vector<8x32xf32> to vector<1x8x32xf32>
    tpu.vector_store %arg8[%c1_37, %c0_38, %c0_39], %117 {strides = array<i32>} : memref<2x8x32xf32, #tpu.memory_space<vmem>>, vector<1x8x32xf32>,
    %c1_40 = arith.constant 1 : index
    %c0_41 = arith.constant 0 : index
    %c0_42 = arith.constant 0 : index
    %118 = vector.load %arg9[%c1_40, %c0_41, %c0_42] : memref<2x8x32xf32, #tpu.memory_space<vmem>>, vector<1x8x32xf32>
    %119 = vector.shape_cast %118 : vector<1x8x32xf32> to vector<8x32xf32>
    %120 = vector.shape_cast %112 : vector<8x32xf32> to vector<1x8x32xf32>
    tpu.vector_store %arg9[%c1_40, %c0_41, %c0_42], %120 {strides = array<i32>} : memref<2x8x32xf32, #tpu.memory_space<vmem>>, vector<1x8x32xf32>,
    %121 = tpu.concatenate %114, %112 in 1 : vector<8x32xf32>, vector<8x32xf32> -> vector<8x64xf32>
    %c2_43 = arith.constant 2 : index
    %c0_44 = arith.constant 0 : index
    %c0_45 = arith.constant 0 : index
    %122 = vector.load %arg3[%c2_43, %c0_44, %c0_45] : memref<3x64x128xf32, #tpu.memory_space<vmem>>, vector<1x64x128xf32>
    %123 = vector.shape_cast %122 : vector<1x64x128xf32> to vector<64x128xf32>
    %cst_46 = arith.constant dense<0.000000e+00> : vector<8x128xf32>
    %124 = tpu.matmul %121, %123, %cst_46 {dimension_numbers = #tpu.dot_dimension_numbers<[1], [0], [0], [1], [0, 0, 1, 1], [], []>} : vector<8x64xf32>, vector<64x128xf32>, vector<8x128xf32> -> vector<8x128xf32>
    %c2_47 = arith.constant 2 : index
    %c0_48 = arith.constant 0 : index
    %c0_49 = arith.constant 0 : index
    %125 = vector.load %arg4[%c2_47, %c0_48, %c0_49] : memref<3x1x128xf32, #tpu.memory_space<vmem>>, vector<1x1x128xf32>
    %126 = vector.shape_cast %125 : vector<1x1x128xf32> to vector<1x128xf32>
    %127 = vector.broadcast %126 : vector<1x128xf32> to vector<8x128xf32>
    %128 = arith.addf %124, %127 : vector<8x128xf32>
    %129 = vector.shape_cast %128 : vector<8x128xf32> to vector<1x8x128xf32>
    %c0_50 = arith.constant 0 : index
    %c0_51 = arith.constant 0 : index
    %c0_52 = arith.constant 0 : index
    %130 = vector.load %arg6[%c0_50, %c0_51, %c0_52] : memref<1x8x128xf32, #tpu.memory_space<vmem>>, vector<1x8x128xf32>
    tpu.vector_store %arg6[%c0_50, %c0_51, %c0_52], %129 {strides = array<i32>} : memref<1x8x128xf32, #tpu.memory_space<vmem>>, vector<1x8x128xf32>,
    %c0_i32_53 = arith.constant 0 : i32
    %131 = arith.cmpi eq, %arg0, %c0_i32_53 : i32
    %132 = arith.extui %131 : i1 to i32
    %c0_i32_54 = arith.constant 0 : i32
    %133 = arith.cmpi ne, %132, %c0_i32_54 : i32
    scf.if %133 {
      %134 = tpu.concatenate %81, %79 in 1 : vector<8x32xf32>, vector<8x32xf32> -> vector<8x64xf32>
      %135 = tpu.concatenate %114, %112 in 1 : vector<8x32xf32>, vector<8x32xf32> -> vector<8x64xf32>
      %136 = tpu.concatenate %134, %135 in 1 : vector<8x64xf32>, vector<8x64xf32> -> vector<8x128xf32>
      %c0_55 = arith.constant 0 : index
      %c0_56 = arith.constant 0 : index
      %137 = vector.load %arg7[%c0_55, %c0_56] : memref<8x128xf32, #tpu.memory_space<vmem>>, vector<8x128xf32>
      tpu.vector_store %arg7[%c0_55, %c0_56], %136 {strides = array<i32>} : memref<8x128xf32, #tpu.memory_space<vmem>>, vector<8x128xf32>,
    } else {
    }
    return
  }
  func.func @transform_0(%arg0: i32, %arg1: memref<1x8xi32, #tpu.memory_space<smem>>) -> (i32, i32) {
    %c0_i32 = arith.constant 0 : i32
    %c0_i32_0 = arith.constant 0 : i32
    %c0_i32_1 = arith.constant 0 : i32
    return %c0_i32, %c0_i32_0 : i32, i32
  }
  func.func @transform_1(%arg0: i32, %arg1: memref<1x8xi32, #tpu.memory_space<smem>>) -> (i32, i32, i32) {
    %c0_i32 = arith.constant 0 : i32
    %c0_i32_0 = arith.constant 0 : i32
    %c0_i32_1 = arith.constant 0 : i32
    %c0_i32_2 = arith.constant 0 : i32
    return %c0_i32, %c0_i32_0, %c0_i32_1 : i32, i32, i32
  }
  func.func @transform_2(%arg0: i32, %arg1: memref<1x8xi32, #tpu.memory_space<smem>>) -> (i32, i32, i32) {
    %c0_i32 = arith.constant 0 : i32
    %c0_i32_0 = arith.constant 0 : i32
    %c0_i32_1 = arith.constant 0 : i32
    %c0_i32_2 = arith.constant 0 : i32
    return %c0_i32, %c0_i32_0, %c0_i32_1 : i32, i32, i32
  }
  func.func @transform_3(%arg0: i32, %arg1: memref<1x8xi32, #tpu.memory_space<smem>>) -> (i32, i32, i32, i32) {
    %c0_i32 = arith.constant 0 : i32
    %c0_i32_0 = arith.constant 0 : i32
    %c0_i32_1 = arith.constant 0 : i32
    %c0_i32_2 = arith.constant 0 : i32
    %c0_i32_3 = arith.constant 0 : i32
    return %c0_i32, %c0_i32_0, %c0_i32_1, %c0_i32_2 : i32, i32, i32, i32
  }
  func.func @transform_4(%arg0: i32, %arg1: memref<1x8xi32, #tpu.memory_space<smem>>) -> (i32, i32, i32) {
    %c0_i32 = arith.constant 0 : i32
    %c0_i32_0 = arith.constant 0 : i32
    %c0_i32_1 = arith.constant 0 : i32
    return %arg0, %c0_i32, %c0_i32_0 : i32, i32, i32
  }
  func.func @transform_5(%arg0: i32, %arg1: memref<1x8xi32, #tpu.memory_space<smem>>) -> (i32, i32) {
    %c0_i32 = arith.constant 0 : i32
    %c0_i32_0 = arith.constant 0 : i32
    %c0_i32_1 = arith.constant 0 : i32
    return %c0_i32, %c0_i32_0 : i32, i32
  }
}

</mosaic_0001>

<llo_original>
// kernel: tpu_custom_call.1
$region0: #{tpu_custom_call.1}
  #allocation0 [shape = 'u32[]', space=smem, size = 0x4, offset = 0x4, fixed_abs, tag = 'smem constant byte address 0x4 - core index']
  #allocation1 [shape = 'u32[144,128]{1,0:T(1,128)}', space=vmem, size = 0x12000, scoped, tag = 'internal scratch']
  #allocation2 [shape = 'f32[2,8,32]{2,1,0:T(8,128)}', space=vmem, size = 0x2000, scoped, tag = 'scratch operand']
  #allocation3 [shape = 'f32[2,8,32]{2,1,0:T(8,128)}', space=vmem, size = 0x2000, scoped, tag = 'scratch operand']
  #allocation4 [shape = 's32[1]{0}', space=sflag, size = 0x4, scoped, tag = 'scoped memory for tpu_custom_call.1']
  #allocation5 [shape = 'u8[512]{0}', space=smem, size = 0x200, scoped, tag = 'prefetched SMEM operand 0']
  %s0 = inlined_call_operand.vmem [shape: s32[1,8], index: 0, kind: input, shape index: {}]
  %s1 = inlined_call_operand.vmem [shape: f32[64,32], index: 1, kind: input, shape index: {}]
  %s2 = inlined_call_operand.hbm [shape: f32[3,64,128], index: 2, kind: input, shape index: {}]
  %s3 = inlined_call_operand.vmem [shape: f32[3,1,128], index: 3, kind: input, shape index: {}]
  %s4 = inlined_call_operand.vmem [shape: f32[2,2,8,32], index: 4, kind: input, shape index: {}]
  %s5 = inlined_call_operand.hbm [shape: f32[1,8,128], index: 5, kind: output, shape index: {0}]
  %s6 = inlined_call_operand.hbm [shape: f32[8,128], index: 6, kind: output, shape index: {1}]
  %7 = xla_tuple %s5, %s6
  %s8 = sld [smem:[#allocation0]]
  $region46: #{tpu_custom_call.1} parent=0
    _
  %s10 = ssub.s32 1, %s8
  %s11 = scalar_select 0, %s10, %s8
  %s12 = sshll.u32 %s0, 4
  %s13 = int_to_ptr.vmem [resolvable:$true] %s12
  %15 = dma.vmem_to_smem %s13, 16, [#allocation5], [#allocation4]
  %16 = dma.done [#allocation4], 16
  %17 = sfence
  $region1: #{tpu_custom_call.1} parent=0
    #allocation6 [shape = 'u8[98304]{0}', space=vmem, size = 0x18000, scoped, tag = 'input window, operand 2, single buffered']
    #allocation7 [shape = 's32[1]{0}', space=sflag, size = 0x4, scoped, tag = 'scoped memory for tpu_custom_call.1']
    #allocation8 [shape = 's32[1]{0}', space=sflag, size = 0x4, scoped, tag = 'scoped memory for tpu_custom_call.1']
    #allocation9 [shape = 'u8[4096]{0}', space=vmem, size = 0x1000, scoped, tag = 'output window, operand 0, single buffered']
    #allocation10 [shape = 'u8[4096]{0}', space=vmem, size = 0x1000, scoped, tag = 'output window, operand 1, single buffered']
    #allocation11 [shape = 's32[1]{0}', space=sflag, size = 0x4, scoped, tag = 'scoped memory for tpu_custom_call.1']
    %18 = vsyncpa [#allocation7], 0
    %19 = vsyncpa [#allocation8], 0
    %20 = vsyncpa [#allocation11], 0
    // Predicated region
    $region2: #{tpu_custom_call.1} parent=1 // pred_check
      _
    $region3: #{tpu_custom_call.1} parent=1 // pred_check_branch
      %22 = sbr.rel (0) target = $region5
    $region4: #{tpu_custom_call.1} parent=1 // pred_region
      _
    $region5: #{tpu_custom_call.1} parent=1 // pred_fallthru
      _
    // Predicated region
    $region6: #{tpu_custom_call.1} parent=1 // pred_check
      _
    $region7: #{tpu_custom_call.1} parent=1 // pred_check_branch
      %24 = sbr.rel (0) target = $region9
    $region8: #{tpu_custom_call.1} parent=1 // pred_region
      %s26 = ssub.s32 3072, 3072
      %27 = vsyncadd [#allocation7], %s26
      %s28 = sshll.u32 [#allocation6], 4
      %s29 = int_to_ptr.vmem [resolvable:$true] %s28
      %34 = dma.hbm_to_vmem [thread:$0]  %s2, 3072, %s29, [#allocation7], 128, 128, 8
    $region9: #{tpu_custom_call.1} parent=1 // pred_fallthru
      _
    // Predicated region
    $region10: #{tpu_custom_call.1} parent=1 // pred_check
      _
    $region11: #{tpu_custom_call.1} parent=1 // pred_check_branch
      %36 = sbr.rel (0) target = $region13
    $region12: #{tpu_custom_call.1} parent=1 // pred_region
      _
    $region13: #{tpu_custom_call.1} parent=1 // pred_fallthru
      _
    // Predicated region
    $region14: #{tpu_custom_call.1} parent=1 // pred_check
      _
    $region15: #{tpu_custom_call.1} parent=1 // pred_check_branch
      %38 = sbr.rel (0) target = $region17
    $region16: #{tpu_custom_call.1} parent=1 // pred_region
      _
    $region17: #{tpu_custom_call.1} parent=1 // pred_fallthru
      _
    // Predicated region
    $region18: #{tpu_custom_call.1} parent=1 // pred_check
      _
    $region19: #{tpu_custom_call.1} parent=1 // pred_check_branch
      %40 = sbr.rel (0) target = $region21
    $region20: #{tpu_custom_call.1} parent=1 // pred_region
      %41 = dma.done [#allocation7], 3072
    $region21: #{tpu_custom_call.1} parent=1 // pred_fallthru
      _
    %p42 = scmp.eq.s32.totalorder 0, 0
    // Predicated region
    $region22: #{tpu_custom_call.1} parent=1 // pred_check
      %p43 = pneg %p42
    $region23: #{tpu_custom_call.1} parent=1 // pred_check_branch
      %45 = sbr.rel (%p43) target = $region25
    $region24: #{tpu_custom_call.1} parent=1 // pred_region
      %v46 = vld [vmem:[%s4] sm:$0xff]
      %v47 = vld [vmem:[%s4 + $0x8] sm:$0xff]
      %vm48 = vcmask 261120
      %49 = vst.msk [vmem:[#allocation2] sm:$0xff] %vm48, %v46
      %50 = vst.msk [vmem:[#allocation2 + $0x8] sm:$0xff] %vm48, %v47
      %s51 = scalar_lea.vmem %s4, 16
      %v52 = vld [vmem:[%s51] sm:$0xff]
      %v53 = vld [vmem:[%s51 + $0x8] sm:$0xff]
      %54 = vst.msk [vmem:[#allocation3] sm:$0xff] %vm48, %v52
      %55 = vst.msk [vmem:[#allocation3 + $0x8] sm:$0xff] %vm48, %v53
    $region25: #{tpu_custom_call.1} parent=1 // pred_fallthru
      _
    %v56 = vlaneseq
    %v57 = vand.u32 %v56, 127
    %s58 = smul.u32 0, 128
    %s59 = sld [smem:[#allocation5 + %s58]]
    %v60 = vstv %s59
    %vm61 = vcmp.eq.s32.totalorder %v57, %v60
    %v62 = vsel %vm61, 1, 0
    %v63 = vcvt.s32.f32 %v62
    %s64 = sadd.s32 %s58, 1
    %s65 = sld [smem:[#allocation5 + %s64]]
    %v66 = vstv %s65
    %vm67 = vcmp.eq.s32.totalorder %v57, %v66
    %v68 = vsel %vm67, 1, 0
    %v69 = vcvt.s32.f32 %v68
    %s70 = sadd.s32 %s58, 2
    %s71 = sld [smem:[#allocation5 + %s70]]
    %v72 = vstv %s71
    %vm73 = vcmp.eq.s32.totalorder %v57, %v72
    %v74 = vsel %vm73, 1, 0
    %v75 = vcvt.s32.f32 %v74
    %s76 = sadd.s32 %s58, 3
    %s77 = sld [smem:[#allocation5 + %s76]]
    %v78 = vstv %s77
    %vm79 = vcmp.eq.s32.totalorder %v57, %v78
    %v80 = vsel %vm79, 1, 0
    %v81 = vcvt.s32.f32 %v80
    %s82 = sadd.s32 %s58, 4
    %s83 = sld [smem:[#allocation5 + %s82]]
    %v84 = vstv %s83
    %vm85 = vcmp.eq.s32.totalorder %v57, %v84
    %v86 = vsel %vm85, 1, 0
    %v87 = vcvt.s32.f32 %v86
    %s88 = sadd.s32 %s58, 5
    %s89 = sld [smem:[#allocation5 + %s88]]
    %v90 = vstv %s89
    %vm91 = vcmp.eq.s32.totalorder %v57, %v90
    %v92 = vsel %vm91, 1, 0
    %v93 = vcvt.s32.f32 %v92
    %s94 = sadd.s32 %s58, 6
    %s95 = sld [smem:[#allocation5 + %s94]]
    %v96 = vstv %s95
    %vm97 = vcmp.eq.s32.totalorder %v57, %v96
    %v98 = vsel %vm97, 1, 0
    %v99 = vcvt.s32.f32 %v98
    %s100 = sadd.s32 %s58, 7
    %s101 = sld [smem:[#allocation5 + %s100]]
    %v102 = vstv %s101
    %vm103 = vcmp.eq.s32.totalorder %v57, %v102
    %v104 = vsel %vm103, 1, 0
    %v105 = vcvt.s32.f32 %v104
    %vm106 = vcmask 1040384
    %v107 = vsel %vm106, %v63, %v69
    %vm108 = vcmask 1041408
    %v109 = vsel %vm108, %v107, %v75
    %vm110 = vcmask 1042432
    %v111 = vsel %vm110, %v109, %v81
    %vm112 = vcmask 1043456
    %v113 = vsel %vm112, %v111, %v87
    %vm114 = vcmask 1044480
    %v115 = vsel %vm114, %v113, %v93
    %vm116 = vcmask 1045504
    %v117 = vsel %vm116, %v115, %v99
    %vm118 = vcmask 1046528
    %v119 = vsel %vm118, %v117, %v105
    %v120 = vld [vmem:[%s1] sm:$0xff]
    %v121 = vld [vmem:[%s1 + $0x8] sm:$0xff]
    %v122 = vld [vmem:[%s1 + $0x10] sm:$0xff]
    %v123 = vld [vmem:[%s1 + $0x18] sm:$0xff]
    %v124 = vld [vmem:[%s1 + $0x20] sm:$0xff]
    %v125 = vld [vmem:[%s1 + $0x28] sm:$0xff]
    %v126 = vld [vmem:[%s1 + $0x30] sm:$0xff]
    %v127 = vld [vmem:[%s1 + $0x38] sm:$0xff]
    %vm128 = vcmask 523264
    %v130 = vsel %vm128, %v119, 0
    %132 = vmatprep.subr.mxu0 0.0
    %133 = vmatpush1.msra.mxu0 %v120
    %134 = vmatprep.subr.mxu0 0.0
    %135 = vmatpush1.msra.mxu0 %v121
    %136 = vmatprep.subr.mxu0 0.0
    %137 = vmatpush1.msra.mxu0 %v122
    %138 = vmatprep.subr.mxu0 0.0
    %139 = vmatpush1.msra.mxu0 %v123
    %140 = vmatprep.subr.mxu0 0.0
    %141 = vmatpush1.msra.mxu0 %v124
    %142 = vmatprep.subr.mxu0 0.0
    %143 = vmatpush1.msra.mxu0 %v125
    %144 = vmatprep.subr.mxu0 0.0
    %145 = vmatpush1.msra.mxu0 %v126
    %146 = vmatprep.subr.mxu0 0.0
    %147 = vmatpush1.msra.mxu0 %v127
    %148 = vmatprep.subr.mxu0 0.0
    %149 = vmatpush1.msra.mxu0 0.0
    %150 = vmatprep.subr.mxu0 0.0
    %151 = vmatpush1.msra.mxu0 0.0
    %152 = vmatprep.subr.mxu0 0.0
    %153 = vmatpush1.msra.mxu0 0.0
    %154 = vmatprep.subr.mxu0 0.0
    %155 = vmatpush1.msra.mxu0 0.0
    %156 = vmatprep.subr.mxu0 0.0
    %157 = vmatpush1.msra.mxu0 0.0
    %158 = vmatprep.subr.mxu0 0.0
    %159 = vmatpush1.msra.mxu0 0.0
    %160 = vmatprep.subr.mxu0 0.0
    %161 = vmatpush1.msra.mxu0 0.0
    %162 = vmatprep.subr.mxu0 0.0
    %163 = vmatpush1.msra.mxu0 0.0
    %164 = vmatprep.subr.mxu0 0.0
    %165 = vmatpush1.msra.mxu0 0.0
    %166 = vmatprep.subr.mxu0 0.0
    %167 = vmatpush1.msra.mxu0 0.0
    %168 = vmatprep.subr.mxu0 0.0
    %169 = vmatpush1.msra.mxu0 0.0
    %170 = vmatprep.subr.mxu0 0.0
    %171 = vmatpush1.msra.mxu0 0.0
    %172 = vmatprep.subr.mxu0 0.0
    %173 = vmatpush1.msra.mxu0 0.0
    %174 = vmatprep.subr.mxu0 0.0
    %175 = vmatpush1.msra.mxu0 0.0
    %176 = vmatprep.subr.mxu0 0.0
    %177 = vmatpush1.msra.mxu0 0.0
    %178 = vmatprep.subr.mxu0 0.0
    %179 = vmatpush1.msra.mxu0 0.0
    %180 = vmatprep.subr.mxu0 0.0
    %181 = vmatpush1.msra.mxu0 0.0
    %182 = vmatprep.subr.mxu0 0.0
    %183 = vmatpush1.msra.mxu0 0.0
    %184 = vmatprep.subr.mxu0 0.0
    %185 = vmatpush1.msra.mxu0 0.0
    %186 = vmatprep.subr.mxu0 0.0
    %187 = vmatpush1.msra.mxu0 0.0
    %188 = vmatprep.subr.mxu0 0.0
    %189 = vmatpush1.msra.mxu0 0.0
    %190 = vmatprep.subr.mxu0 0.0
    %191 = vmatpush1.msra.mxu0 0.0
    %192 = vmatprep.subr.mxu0 0.0
    %193 = vmatpush1.msra.mxu0 0.0
    %194 = vmatprep.subr.mxu0 0.0
    %195 = vmatpush1.msra.mxu0 0.0
    %196 = vmatprep.mubr.f32.mxu0 0.0
    %197 = vmatmul.mubr.f32.gmra.mrb[0].mxu0 %v130
    %v198 = vpop.f32.mrb[0].mxu0
    %v199 = vadd.f32 0.0, %v198
    %v200 = vpop.f32.mrb[0].mxu0
    %201 = vdwg.mxu0
    %v202 = vld [vmem:[#allocation2] sm:$0xff]
    %v203 = vld [vmem:[#allocation3] sm:$0xff]
    %205 = vrot.lane.b32.xlu0 %v202, 32
    %v206 = vpop.permute.xlu0 %205
    %vm208 = vcmask 261120
    %v209 = vsel %vm208, %v199, %v206
    %v210 = vld [vmem:[#allocation6] sm:$0xff]
    %v211 = vld [vmem:[#allocation6 + $0x8] sm:$0xff]
    %v212 = vld [vmem:[#allocation6 + $0x10] sm:$0xff]
    %v213 = vld [vmem:[#allocation6 + $0x18] sm:$0xff]
    %v214 = vld [vmem:[#allocation6 + $0x20] sm:$0xff]
    %v215 = vld [vmem:[#allocation6 + $0x28] sm:$0xff]
    %v216 = vld [vmem:[#allocation6 + $0x30] sm:$0xff]
    %v217 = vld [vmem:[#allocation6 + $0x38] sm:$0xff]
    %v218 = vld [vmem:[%s3] sm:$0x1]
    %v220 = vlaneseq
    %v221 = vshrl.u32 %v220, 7
    %v222 = vsub.s32 0, %v221
    %v223 = vrot.slane %v218, %v222
    %v226 = vsel %vm128, %v209, 0
    %228 = vmatprep.subr.mxu0 0.0
    %229 = vmatpush1.msra.mxu0 %v210
    %230 = vmatprep.subr.mxu0 0.0
    %231 = vmatpush1.msra.mxu0 %v211
    %232 = vmatprep.subr.mxu0 0.0
    %233 = vmatpush1.msra.mxu0 %v212
    %234 = vmatprep.subr.mxu0 0.0
    %235 = vmatpush1.msra.mxu0 %v213
    %236 = vmatprep.subr.mxu0 0.0
    %237 = vmatpush1.msra.mxu0 %v214
    %238 = vmatprep.subr.mxu0 0.0
    %239 = vmatpush1.msra.mxu0 %v215
    %240 = vmatprep.subr.mxu0 0.0
    %241 = vmatpush1.msra.mxu0 %v216
    %242 = vmatprep.subr.mxu0 0.0
    %243 = vmatpush1.msra.mxu0 %v217
    %244 = vmatprep.subr.mxu0 0.0
    %245 = vmatpush1.msra.mxu0 0.0
    %246 = vmatprep.subr.mxu0 0.0
    %247 = vmatpush1.msra.mxu0 0.0
    %248 = vmatprep.subr.mxu0 0.0
    %249 = vmatpush1.msra.mxu0 0.0
    %250 = vmatprep.subr.mxu0 0.0
    %251 = vmatpush1.msra.mxu0 0.0
    %252 = vmatprep.subr.mxu0 0.0
    %253 = vmatpush1.msra.mxu0 0.0
    %254 = vmatprep.subr.mxu0 0.0
    %255 = vmatpush1.msra.mxu0 0.0
    %256 = vmatprep.subr.mxu0 0.0
    %257 = vmatpush1.msra.mxu0 0.0
    %258 = vmatprep.subr.mxu0 0.0
    %259 = vmatpush1.msra.mxu0 0.0
    %260 = vmatprep.subr.mxu0 0.0
    %261 = vmatpush1.msra.mxu0 0.0
    %262 = vmatprep.subr.mxu0 0.0
    %263 = vmatpush1.msra.mxu0 0.0
    %264 = vmatprep.subr.mxu0 0.0
    %265 = vmatpush1.msra.mxu0 0.0
    %266 = vmatprep.subr.mxu0 0.0
    %267 = vmatpush1.msra.mxu0 0.0
    %268 = vmatprep.subr.mxu0 0.0
    %269 = vmatpush1.msra.mxu0 0.0
    %270 = vmatprep.subr.mxu0 0.0
    %271 = vmatpush1.msra.mxu0 0.0
    %272 = vmatprep.subr.mxu0 0.0
    %273 = vmatpush1.msra.mxu0 0.0
    %274 = vmatprep.subr.mxu0 0.0
    %275 = vmatpush1.msra.mxu0 0.0
    %276 = vmatprep.subr.mxu0 0.0
    %277 = vmatpush1.msra.mxu0 0.0
    %278 = vmatprep.subr.mxu0 0.0
    %279 = vmatpush1.msra.mxu0 0.0
    %280 = vmatprep.subr.mxu0 0.0
    %281 = vmatpush1.msra.mxu0 0.0
    %282 = vmatprep.subr.mxu0 0.0
    %283 = vmatpush1.msra.mxu0 0.0
    %284 = vmatprep.subr.mxu0 0.0
    %285 = vmatpush1.msra.mxu0 0.0
    %286 = vmatprep.subr.mxu0 0.0
    %287 = vmatpush1.msra.mxu0 0.0
    %288 = vmatprep.subr.mxu0 0.0
    %289 = vmatpush1.msra.mxu0 0.0
    %290 = vmatprep.subr.mxu0 0.0
    %291 = vmatpush1.msra.mxu0 0.0
    %292 = vmatprep.mubr.f32.mxu0 0.0
    %293 = vmatmul.mubr.f32.gmra.mrb[0].mxu0 %v226
    %v294 = vpop.f32.mrb[0].mxu0
    %v295 = vadd.f32 %v223, %v294
    %v296 = vpop.f32.mrb[0].mxu0
    %297 = vdwg.mxu0
    %v298 = vxor.u32 %v295, 2147483648
    %v299 = vmul.f32 %v298, 1.442695
    %v300 = vpow.pop %v299
    %v301 = vadd.f32 %v300, 1.0
    %v302 = vrcp.pop %v301
    %v303 = vmul.f32 1.0, %v302
    %v304 = vtanh.pop %v295
    %306 = vrot.lane.b32.xlu0 %v203, 32
    %v307 = vpop.permute.xlu0 %306
    %v309 = vmul.f32 %v303, %v307
    %311 = vrot.lane.b32.xlu0 %v304, 64
    %v312 = vpop.permute.xlu0 %311
    %v314 = vmul.f32 %v303, %v312
    %316 = vrot.lane.b32.xlu0 %v314, 32
    %v317 = vpop.permute.xlu0 %316
    %v319 = vadd.f32 %v309, %v317
    %v320 = vtanh.pop %v319
    %322 = vrot.lane.b32.xlu0 %v320, 64
    %v323 = vpop.permute.xlu0 %322
    %v325 = vmul.f32 %v303, %v323
    %327 = vrot.lane.b32.xlu0 %v325, 32
    %v328 = vpop.permute.xlu0 %327
    %330 = vst.msk [vmem:[#allocation2] sm:$0xff] %vm208, %v328
    %332 = vrot.lane.b32.xlu0 %v319, 96
    %v333 = vpop.permute.xlu0 %332
    %335 = vst.msk [vmem:[#allocation3] sm:$0xff] %vm208, %v333
    %s336 = scalar_lea.vmem [#allocation2], 8
    %v337 = vld [vmem:[%s336] sm:$0xff]
    %s338 = scalar_lea.vmem [#allocation3], 8
    %v339 = vld [vmem:[%s338] sm:$0xff]
    %341 = vrot.lane.b32.xlu0 %v337, 32
    %v342 = vpop.permute.xlu0 %341
    %v344 = vsel %vm208, %v328, %v342
    %s345 = scalar_lea.vmem [#allocation6], 64
    %v346 = vld [vmem:[%s345] sm:$0xff]
    %v347 = vld [vmem:[%s345 + $0x8] sm:$0xff]
    %v348 = vld [vmem:[%s345 + $0x10] sm:$0xff]
    %v349 = vld [vmem:[%s345 + $0x18] sm:$0xff]
    %v350 = vld [vmem:[%s345 + $0x20] sm:$0xff]
    %v351 = vld [vmem:[%s345 + $0x28] sm:$0xff]
    %v352 = vld [vmem:[%s345 + $0x30] sm:$0xff]
    %v353 = vld [vmem:[%s345 + $0x38] sm:$0xff]
    %s354 = scalar_lea.vmem %s3, 1
    %v355 = vld [vmem:[%s354] sm:$0x1]
    %v357 = vlaneseq
    %v358 = vshrl.u32 %v357, 7
    %v359 = vsub.s32 0, %v358
    %v360 = vrot.slane %v355, %v359
    %v363 = vsel %vm128, %v344, 0
    %365 = vmatprep.subr.mxu0 0.0
    %366 = vmatpush1.msra.mxu0 %v346
    %367 = vmatprep.subr.mxu0 0.0
    %368 = vmatpush1.msra.mxu0 %v347
    %369 = vmatprep.subr.mxu0 0.0
    %370 = vmatpush1.msra.mxu0 %v348
    %371 = vmatprep.subr.mxu0 0.0
    %372 = vmatpush1.msra.mxu0 %v349
    %373 = vmatprep.subr.mxu0 0.0
    %374 = vmatpush1.msra.mxu0 %v350
    %375 = vmatprep.subr.mxu0 0.0
    %376 = vmatpush1.msra.mxu0 %v351
    %377 = vmatprep.subr.mxu0 0.0
    %378 = vmatpush1.msra.mxu0 %v352
    %379 = vmatprep.subr.mxu0 0.0
    %380 = vmatpush1.msra.mxu0 %v353
    %381 = vmatprep.subr.mxu0 0.0
    %382 = vmatpush1.msra.mxu0 0.0
    %383 = vmatprep.subr.mxu0 0.0
    %384 = vmatpush1.msra.mxu0 0.0
    %385 = vmatprep.subr.mxu0 0.0
    %386 = vmatpush1.msra.mxu0 0.0
    %387 = vmatprep.subr.mxu0 0.0
    %388 = vmatpush1.msra.mxu0 0.0
    %389 = vmatprep.subr.mxu0 0.0
    %390 = vmatpush1.msra.mxu0 0.0
    %391 = vmatprep.subr.mxu0 0.0
    %392 = vmatpush1.msra.mxu0 0.0
    %393 = vmatprep.subr.mxu0 0.0
    %394 = vmatpush1.msra.mxu0 0.0
    %395 = vmatprep.subr.mxu0 0.0
    %396 = vmatpush1.msra.mxu0 0.0
    %397 = vmatprep.subr.mxu0 0.0
    %398 = vmatpush1.msra.mxu0 0.0
    %399 = vmatprep.subr.mxu0 0.0
    %400 = vmatpush1.msra.mxu0 0.0
    %401 = vmatprep.subr.mxu0 0.0
    %402 = vmatpush1.msra.mxu0 0.0
    %403 = vmatprep.subr.mxu0 0.0
    %404 = vmatpush1.msra.mxu0 0.0
    %405 = vmatprep.subr.mxu0 0.0
    %406 = vmatpush1.msra.mxu0 0.0
    %407 = vmatprep.subr.mxu0 0.0
    %408 = vmatpush1.msra.mxu0 0.0
    %409 = vmatprep.subr.mxu0 0.0
    %410 = vmatpush1.msra.mxu0 0.0
    %411 = vmatprep.subr.mxu0 0.0
    %412 = vmatpush1.msra.mxu0 0.0
    %413 = vmatprep.subr.mxu0 0.0
    %414 = vmatpush1.msra.mxu0 0.0
    %415 = vmatprep.subr.mxu0 0.0
    %416 = vmatpush1.msra.mxu0 0.0
    %417 = vmatprep.subr.mxu0 0.0
    %418 = vmatpush1.msra.mxu0 0.0
    %419 = vmatprep.subr.mxu0 0.0
    %420 = vmatpush1.msra.mxu0 0.0
    %421 = vmatprep.subr.mxu0 0.0
    %422 = vmatpush1.msra.mxu0 0.0
    %423 = vmatprep.subr.mxu0 0.0
    %424 = vmatpush1.msra.mxu0 0.0
    %425 = vmatprep.subr.mxu0 0.0
    %426 = vmatpush1.msra.mxu0 0.0
    %427 = vmatprep.subr.mxu0 0.0
    %428 = vmatpush1.msra.mxu0 0.0
    %429 = vmatprep.mubr.f32.mxu0 0.0
    %430 = vmatmul.mubr.f32.gmra.mrb[0].mxu0 %v363
    %v431 = vpop.f32.mrb[0].mxu0
    %v432 = vadd.f32 %v360, %v431
    %v433 = vpop.f32.mrb[0].mxu0
    %434 = vdwg.mxu0
    %v435 = vxor.u32 %v432, 2147483648
    %v436 = vmul.f32 %v435, 1.442695
    %v437 = vpow.pop %v436
    %v438 = vadd.f32 %v437, 1.0
    %v439 = vrcp.pop %v438
    %v440 = vmul.f32 1.0, %v439
    %v441 = vtanh.pop %v432
    %443 = vrot.lane.b32.xlu0 %v339, 32
    %v444 = vpop.permute.xlu0 %443
    %v446 = vmul.f32 %v440, %v444
    %448 = vrot.lane.b32.xlu0 %v441, 64
    %v449 = vpop.permute.xlu0 %448
    %v451 = vmul.f32 %v440, %v449
    %453 = vrot.lane.b32.xlu0 %v451, 32
    %v454 = vpop.permute.xlu0 %453
    %v456 = vadd.f32 %v446, %v454
    %v457 = vtanh.pop %v456
    %459 = vrot.lane.b32.xlu0 %v457, 64
    %v460 = vpop.permute.xlu0 %459
    %v462 = vmul.f32 %v440, %v460
    %464 = vrot.lane.b32.xlu0 %v462, 32
    %v465 = vpop.permute.xlu0 %464
    %467 = vst.msk [vmem:[%s336] sm:$0xff] %vm208, %v465
    %469 = vrot.lane.b32.xlu0 %v456, 96
    %v470 = vpop.permute.xlu0 %469
    %472 = vst.msk [vmem:[%s338] sm:$0xff] %vm208, %v470
    %v473 = vsel %vm208, %v465, %v456
    %s474 = scalar_lea.vmem [#allocation6], 128
    %v475 = vld [vmem:[%s474] sm:$0xff]
    %v476 = vld [vmem:[%s474 + $0x8] sm:$0xff]
    %v477 = vld [vmem:[%s474 + $0x10] sm:$0xff]
    %v478 = vld [vmem:[%s474 + $0x18] sm:$0xff]
    %v479 = vld [vmem:[%s474 + $0x20] sm:$0xff]
    %v480 = vld [vmem:[%s474 + $0x28] sm:$0xff]
    %v481 = vld [vmem:[%s474 + $0x30] sm:$0xff]
    %v482 = vld [vmem:[%s474 + $0x38] sm:$0xff]
    %s483 = scalar_lea.vmem %s3, 2
    %v484 = vld [vmem:[%s483] sm:$0x1]
    %v486 = vlaneseq
    %v487 = vshrl.u32 %v486, 7
    %v488 = vsub.s32 0, %v487
    %v489 = vrot.slane %v484, %v488
    %v492 = vsel %vm128, %v473, 0
    %494 = vmatprep.subr.mxu0 0.0
    %495 = vmatpush1.msra.mxu0 %v475
    %496 = vmatprep.subr.mxu0 0.0
    %497 = vmatpush1.msra.mxu0 %v476
    %498 = vmatprep.subr.mxu0 0.0
    %499 = vmatpush1.msra.mxu0 %v477
    %500 = vmatprep.subr.mxu0 0.0
    %501 = vmatpush1.msra.mxu0 %v478
    %502 = vmatprep.subr.mxu0 0.0
    %503 = vmatpush1.msra.mxu0 %v479
    %504 = vmatprep.subr.mxu0 0.0
    %505 = vmatpush1.msra.mxu0 %v480
    %506 = vmatprep.subr.mxu0 0.0
    %507 = vmatpush1.msra.mxu0 %v481
    %508 = vmatprep.subr.mxu0 0.0
    %509 = vmatpush1.msra.mxu0 %v482
    %510 = vmatprep.subr.mxu0 0.0
    %511 = vmatpush1.msra.mxu0 0.0
    %512 = vmatprep.subr.mxu0 0.0
    %513 = vmatpush1.msra.mxu0 0.0
    %514 = vmatprep.subr.mxu0 0.0
    %515 = vmatpush1.msra.mxu0 0.0
    %516 = vmatprep.subr.mxu0 0.0
    %517 = vmatpush1.msra.mxu0 0.0
    %518 = vmatprep.subr.mxu0 0.0
    %519 = vmatpush1.msra.mxu0 0.0
    %520 = vmatprep.subr.mxu0 0.0
    %521 = vmatpush1.msra.mxu0 0.0
    %522 = vmatprep.subr.mxu0 0.0
    %523 = vmatpush1.msra.mxu0 0.0
    %524 = vmatprep.subr.mxu0 0.0
    %525 = vmatpush1.msra.mxu0 0.0
    %526 = vmatprep.subr.mxu0 0.0
    %527 = vmatpush1.msra.mxu0 0.0
    %528 = vmatprep.subr.mxu0 0.0
    %529 = vmatpush1.msra.mxu0 0.0
    %530 = vmatprep.subr.mxu0 0.0
    %531 = vmatpush1.msra.mxu0 0.0
    %532 = vmatprep.subr.mxu0 0.0
    %533 = vmatpush1.msra.mxu0 0.0
    %534 = vmatprep.subr.mxu0 0.0
    %535 = vmatpush1.msra.mxu0 0.0
    %536 = vmatprep.subr.mxu0 0.0
    %537 = vmatpush1.msra.mxu0 0.0
    %538 = vmatprep.subr.mxu0 0.0
    %539 = vmatpush1.msra.mxu0 0.0
    %540 = vmatprep.subr.mxu0 0.0
    %541 = vmatpush1.msra.mxu0 0.0
    %542 = vmatprep.subr.mxu0 0.0
    %543 = vmatpush1.msra.mxu0 0.0
    %544 = vmatprep.subr.mxu0 0.0
    %545 = vmatpush1.msra.mxu0 0.0
    %546 = vmatprep.subr.mxu0 0.0
    %547 = vmatpush1.msra.mxu0 0.0
    %548 = vmatprep.subr.mxu0 0.0
    %549 = vmatpush1.msra.mxu0 0.0
    %550 = vmatprep.subr.mxu0 0.0
    %551 = vmatpush1.msra.mxu0 0.0
    %552 = vmatprep.subr.mxu0 0.0
    %553 = vmatpush1.msra.mxu0 0.0
    %554 = vmatprep.subr.mxu0 0.0
    %555 = vmatpush1.msra.mxu0 0.0
    %556 = vmatprep.subr.mxu0 0.0
    %557 = vmatpush1.msra.mxu0 0.0
    %558 = vmatprep.mubr.f32.mxu0 0.0
    %559 = vmatmul.mubr.f32.gmra.mrb[0].mxu0 %v492
    %v560 = vpop.f32.mrb[0].mxu0
    %v561 = vadd.f32 %v489, %v560
    %v562 = vpop.f32.mrb[0].mxu0
    %563 = vdwg.mxu0
    %564 = vst [vmem:[#allocation9] sm:$0xff] %v561
    // Predicated region
    $region26: #{tpu_custom_call.1} parent=1 // pred_check
      %p565 = pneg %p42
    $region27: #{tpu_custom_call.1} parent=1 // pred_check_branch
      %567 = sbr.rel (%p565) target = $region29
    $region28: #{tpu_custom_call.1} parent=1 // pred_region
      %v568 = vsel %vm208, %v328, %v319
      %569 = vrot.lane.b32.xlu0 %v473, 64
      %v570 = vpop.permute.xlu0 %569
      %v572 = vsel %vm128, %v568, %v570
      %573 = vst [vmem:[#allocation10] sm:$0xff] %v572
    $region29: #{tpu_custom_call.1} parent=1 // pred_fallthru
      _
    // Predicated region
    $region30: #{tpu_custom_call.1} parent=1 // pred_check
      _
    $region31: #{tpu_custom_call.1} parent=1 // pred_check_branch
      %575 = sbr.rel (0) target = $region33
    $region32: #{tpu_custom_call.1} parent=1 // pred_region
      %s577 = ssub.s32 128, 128
      %578 = vsyncadd [#allocation8], %s577
      %s580 = sshll.u32 [#allocation9], 4
      %s581 = int_to_ptr.vmem [resolvable:$true] %s580
      %583 = dma.vmem_to_hbm [thread:$0]  %s581, 128, %s5, [#allocation8]
    $region33: #{tpu_custom_call.1} parent=1 // pred_fallthru
      _
    // Predicated region
    $region34: #{tpu_custom_call.1} parent=1 // pred_check
      _
    $region35: #{tpu_custom_call.1} parent=1 // pred_check_branch
      %585 = sbr.rel (0) target = $region37
    $region36: #{tpu_custom_call.1} parent=1 // pred_region
      %s587 = ssub.s32 128, 128
      %588 = vsyncadd [#allocation11], %s587
      %s590 = sshll.u32 [#allocation10], 4
      %s591 = int_to_ptr.vmem [resolvable:$true] %s590
      %593 = dma.vmem_to_hbm [thread:$0]  %s591, 128, %s6, [#allocation11]
    $region37: #{tpu_custom_call.1} parent=1 // pred_fallthru
      _
    // Predicated region
    $region38: #{tpu_custom_call.1} parent=1 // pred_check
      _
    $region39: #{tpu_custom_call.1} parent=1 // pred_check_branch
      %595 = sbr.rel (0) target = $region41
    $region40: #{tpu_custom_call.1} parent=1 // pred_region
      %596 = dma.done [#allocation8], 128
    $region41: #{tpu_custom_call.1} parent=1 // pred_fallthru
      _
    // Predicated region
    $region42: #{tpu_custom_call.1} parent=1 // pred_check
      _
    $region43: #{tpu_custom_call.1} parent=1 // pred_check_branch
      %598 = sbr.rel (0) target = $region45
    $region44: #{tpu_custom_call.1} parent=1 // pred_region
      %599 = dma.done [#allocation11], 128
    $region45: #{tpu_custom_call.1} parent=1 // pred_fallthru
      _
    %600 = vsyncpa [#allocation7], 1
    %601 = vsyncpa [#allocation8], 1
    %602 = vsyncpa [#allocation11], 1

</llo_original>
